<compile_context>
chip_gen: v7x
topology: tpu7x:2x2x1
jax: 0.10.0
libtpu: 0.0.40
codegen_flags: <defaults>
</compile_context>

<pallas_src>
import jax
import jax.numpy as jnp
from jax.experimental import pallas as pl
from jax.experimental.pallas import tpu as pltpu


def _make_kernel(tb, n_x, n_m, v_tot, has_mark):
    """Builds the kernel for a fixed (batch tile, variate split) configuration."""

    def kernel(*refs):
        if has_mark:
            x_ref, xm_ref, w_ref, b_ref, o_ref, xt_ref = refs
        else:
            x_ref, w_ref, b_ref, o_ref, xt_ref = refs
            xm_ref = None

        d_idx = pl.program_id(1)

        # Transpose native-layout activations [K, V] -> [V, K] into the scratch
        # ONCE per batch tile; the result is reused across the whole d_model sweep
        # (the x / x_mark block indices are constant over the innermost grid axis,
        # so Pallas does not re-DMA them either).
        @pl.when(d_idx == 0)
        def _():
            for t in range(tb):
                r0 = t * v_tot
                xt_ref[pl.ds(r0, n_x), :] = x_ref[t].T
                if has_mark:
                    # x / x_mark are concatenated here, in VMEM only — no HBM pass.
                    xt_ref[pl.ds(r0 + n_x, n_m), :] = xm_ref[t].T

        # One MXU contraction for the whole (batch-tile x variate) block, in the
        # natural [M, K] @ [K, N] orientation (no per-step operand transpose).
        y = jnp.dot(xt_ref[...], w_ref[...], preferred_element_type=jnp.float32)
        y = y + b_ref[...]                      # f32 bias, broadcast once per step
        for t in range(tb):
            o_ref[t] = y[t * v_tot:(t + 1) * v_tot, :].astype(o_ref.dtype)

    return kernel


def _pick_td(d_model):
    # d_model tile (lane axis of weight / bias / output). Full extent up to 1024;
    # otherwise the largest 256/128-aligned divisor so every block is lane-dense.
    if d_model <= 1024:
        return d_model
    for cand in (1024, 512, 256, 128):
        if d_model % cand == 0:
            return cand
    return d_model  # full-extent fallback for odd d_model


def _pick_tb(batch, v_tot, k, itemsize):
    # Batch tile: amortize per-grid-step overhead when the variate count is small,
    # but keep >= 2 batch blocks when possible (megacore / v7x dual TC) and bound
    # the activation block size.
    if v_tot >= 256:
        return 1
    for cand in (8, 4, 2, 1):
        if batch % cand != 0:
            continue
        if batch >= 2 and batch // cand < 2:
            continue
        if cand * v_tot * k * itemsize > (4 << 20):
            continue
        return cand
    return 1


@jax.jit
def data_embedding_inverted(x, x_mark, weight_kd, bias_f32):
    """Inverted data embedding.

    x:         [B, L, N]          activations in native (time-major) layout
    x_mark:    [B, L, M] or None  time-feature marks in native layout
    weight_kd: [L, D]             value-embedding weight, pre-transposed from the
                                  PyTorch [D, L] Linear weight and pre-cast to the
                                  compute dtype (see prepare_params)
    bias_f32:  [1, D] float32     value-embedding bias (kept f32; added in f32)
    returns    [B, N(+M), D]      in x.dtype
    """
    has_mark = x_mark is not None
    b, k, n_x = x.shape
    n_m = x_mark.shape[2] if has_mark else 0
    v_tot = n_x + n_m
    d_model = weight_kd.shape[1]

    # Weight should already be in the compute dtype (prepare_params does this once
    # at setup); cast only as a fallback for mismatched callers.
    w = weight_kd if weight_kd.dtype == x.dtype else weight_kd.astype(x.dtype)
    if has_mark and x_mark.dtype != x.dtype:
        x_mark = x_mark.astype(x.dtype)
    bias2d = bias_f32.reshape(1, d_model).astype(jnp.float32)

    td = _pick_td(d_model)
    tb = _pick_tb(b, v_tot, k, x.dtype.itemsize)
    n_d = pl.cdiv(d_model, td)
    grid = (b // tb, n_d)                      # d_model innermost: x fetched once / batch tile

    x_spec = pl.BlockSpec((tb, k, n_x), lambda bi, di: (bi, 0, 0))
    w_spec = pl.BlockSpec((k, td), lambda bi, di: (0, di))
    b_spec = pl.BlockSpec((1, td), lambda bi, di: (0, di))
    o_spec = pl.BlockSpec((tb, v_tot, td), lambda bi, di: (bi, 0, di))

    in_specs = [x_spec]
    operands = [x]
    if has_mark:
        in_specs.append(pl.BlockSpec((tb, k, n_m), lambda bi, di: (bi, 0, 0)))
        operands.append(x_mark)
    in_specs += [w_spec, b_spec]
    operands += [w, bias2d]

    kernel = _make_kernel(tb, n_x, n_m, v_tot, has_mark)

    out = pl.pallas_call(
        kernel,
        out_shape=jax.ShapeDtypeStruct((b, v_tot, d_model), x.dtype),
        grid_spec=pltpu.PrefetchScalarGridSpec(
            num_scalar_prefetch=0,
            grid=grid,
            in_specs=in_specs,
            out_specs=o_spec,
            # Transposed-activation scratch, persistent across the d_model sweep.
            scratch_shapes=[pltpu.VMEM((tb * v_tot, k), x.dtype)],
        ),
        compiler_params=pltpu.CompilerParams(
            # batch axis parallel (megacore); d_model axis must be sequential since
            # the transposed-activation scratch is reused across it.
            dimension_semantics=("parallel", "arbitrary"),
        ),
    )(*operands)
    # TODO(synk): train-mode dropout masking not implemented (identity in eval mode).
    return out


def prepare_params(weight_dk, bias_d, compute_dtype):
    """One-time parameter prep (outside the jitted forward): transpose PyTorch's
    [D, L] Linear weight to [L, D] and cast to the compute dtype; keep the bias in
    float32 with shape [1, D]."""
    weight_kd = jnp.asarray(weight_dk).T.astype(compute_dtype)
    bias_f32 = jnp.asarray(bias_d, jnp.float32).reshape(1, -1)
    return weight_kd, bias_f32


def _linear_init(key, c_in, d_model):
    # nn.Linear default init: U(-1/sqrt(fan_in), 1/sqrt(fan_in)); weight is [D, K].
    kw, kb = jax.random.split(key)
    bound = 1.0 / (c_in ** 0.5)
    weight = jax.random.uniform(kw, (d_model, c_in), jnp.float32, -bound, bound)
    bias = jax.random.uniform(kb, (d_model,), jnp.float32, -bound, bound)
    return weight, bias


def _reference(x, x_mark, weight_dk, bias_d):
    xv = jnp.swapaxes(x, 1, 2)
    if x_mark is not None:
        xv = jnp.concatenate([xv, jnp.swapaxes(x_mark, 1, 2)], axis=1)
    return jnp.einsum("bvk,dk->bvd", xv, weight_dk) + bias_d


if __name__ == "__main__":
    key = jax.random.PRNGKey(0)
    k1, k2, k3, k4, k5, k6 = jax.random.split(key, 6)

    # ---- test 1: f32, with x_mark (B=2, L=16, N=4, M=3, D=32) ----
    B, L, N, M, D = 2, 16, 4, 3, 32
    x = jax.random.normal(k1, (B, L, N), jnp.float32)
    xm = jax.random.normal(k2, (B, L, M), jnp.float32)
    w_dk, b_d = _linear_init(k3, c_in=L, d_model=D)
    w_kd, b_f32 = prepare_params(w_dk, b_d, jnp.float32)

    y = jax.block_until_ready(data_embedding_inverted(x, xm, w_kd, b_f32))
    y_ref = _reference(x, xm, w_dk, b_d)
    assert y.shape == (B, N + M, D)
    # Tolerance covers possible reduced-precision MXU passes for f32 operands.
    assert jnp.allclose(y, y_ref, atol=2e-2, rtol=2e-2)

    # ---- test 2: f32, x_mark=None branch ----
    y2 = jax.block_until_ready(data_embedding_inverted(x, None, w_kd, b_f32))
    y2_ref = _reference(x, None, w_dk, b_d)
    assert y2.shape == (B, N, D)
    assert jnp.allclose(y2, y2_ref, atol=2e-2, rtol=2e-2)

    # ---- test 3: bf16 operands (halved HBM traffic), f32 bias / accumulation ----
    w_kd_bf, _ = prepare_params(w_dk, b_d, jnp.bfloat16)
    y3 = jax.block_until_ready(
        data_embedding_inverted(
            x.astype(jnp.bfloat16), xm.astype(jnp.bfloat16), w_kd_bf, b_f32))
    assert y3.shape == (B, N + M, D)
    assert y3.dtype == jnp.bfloat16
    assert jnp.allclose(y3.astype(jnp.float32), y_ref, atol=5e-2, rtol=5e-2)

    # ---- test 4: batch tile > 1 and a tiled d_model sweep (tb=2, n_d=2) ----
    B4, L4, N4, M4, D4 = 4, 16, 5, 3, 2048
    x4 = jax.random.normal(k4, (B4, L4, N4), jnp.float32)
    xm4 = jax.random.normal(k5, (B4, L4, M4), jnp.float32)
    w4_dk, b4_d = _linear_init(k6, c_in=L4, d_model=D4)
    w4_kd, b4_f32 = prepare_params(w4_dk, b4_d, jnp.float32)
    y4 = jax.block_until_ready(data_embedding_inverted(x4, xm4, w4_kd, b4_f32))
    y4_ref = _reference(x4, xm4, w4_dk, b4_d)
    assert y4.shape == (B4, N4 + M4, D4)
    assert jnp.allclose(y4, y4_ref, atol=2e-2, rtol=2e-2)

    print("KERNEL_OK")
</pallas_src>

<mosaic_0001>
module attributes {stable_mosaic.version = 11 : i64} {
  func.func @kernel(%arg0: i32, %arg1: i32, %arg2: memref<1x16x4xf32, #tpu.memory_space<vmem>>, %arg3: memref<1x16x3xf32, #tpu.memory_space<vmem>>, %arg4: memref<16x32xf32, #tpu.memory_space<vmem>>, %arg5: memref<1x32xf32, #tpu.memory_space<vmem>>, %arg6: memref<1x7x32xf32, #tpu.memory_space<vmem>>, %arg7: memref<7x16xf32, #tpu.memory_space<vmem>>) attributes {dimension_semantics = [#tpu.dimension_semantics<parallel>, #tpu.dimension_semantics<arbitrary>], iteration_bounds = array<i64: 2, 1>, scalar_prefetch = 0 : i64, scratch_operands = 1 : i64, tpu.core_type = #tpu.core_type<tc>, window_params = [{transform_indices = @transform_0, window_bounds = array<i64: 1, 16, 4>}, {transform_indices = @transform_1, window_bounds = array<i64: 1, 16, 3>}, {transform_indices = @transform_2, window_bounds = array<i64: 16, 32>}, {transform_indices = @transform_3, window_bounds = array<i64: 1, 32>}, {transform_indices = @transform_4, window_bounds = array<i64: 1, 7, 32>}]} {
    %c0_i32 = arith.constant 0 : i32
    %0 = arith.cmpi eq, %arg1, %c0_i32 : i32
    %1 = arith.extui %0 : i1 to i32
    %c0_i32_0 = arith.constant 0 : i32
    %2 = arith.cmpi ne, %1, %c0_i32_0 : i32
    scf.if %2 {
      %c0_9 = arith.constant 0 : index
      %c0_10 = arith.constant 0 : index
      %c0_11 = arith.constant 0 : index
      %12 = vector.load %arg2[%c0_9, %c0_10, %c0_11] : memref<1x16x4xf32, #tpu.memory_space<vmem>>, vector<1x16x4xf32>
      %13 = vector.shape_cast %12 : vector<1x16x4xf32> to vector<16x4xf32>
      %14 = tpu.transpose %13, [1, 0] : vector<16x4xf32> -> vector<4x16xf32>
      %c0_12 = arith.constant 0 : index
      %c0_13 = arith.constant 0 : index
      %15 = vector.load %arg7[%c0_12, %c0_13] : memref<7x16xf32, #tpu.memory_space<vmem>>, vector<4x16xf32>
      tpu.vector_store %arg7[%c0_12, %c0_13], %14 {strides = array<i32>} : memref<7x16xf32, #tpu.memory_space<vmem>>, vector<4x16xf32>,
      %c0_14 = arith.constant 0 : index
      %c0_15 = arith.constant 0 : index
      %c0_16 = arith.constant 0 : index
      %16 = vector.load %arg3[%c0_14, %c0_15, %c0_16] : memref<1x16x3xf32, #tpu.memory_space<vmem>>, vector<1x16x3xf32>
      %17 = vector.shape_cast %16 : vector<1x16x3xf32> to vector<16x3xf32>
      %18 = tpu.transpose %17, [1, 0] : vector<16x3xf32> -> vector<3x16xf32>
      %c4 = arith.constant 4 : index
      %c0_17 = arith.constant 0 : index
      %19 = vector.load %arg7[%c4, %c0_17] : memref<7x16xf32, #tpu.memory_space<vmem>>, vector<3x16xf32>
      tpu.vector_store %arg7[%c4, %c0_17], %18 {strides = array<i32>} : memref<7x16xf32, #tpu.memory_space<vmem>>, vector<3x16xf32>,
    } else {
    }
    %c0 = arith.constant 0 : index
    %c0_1 = arith.constant 0 : index
    %3 = vector.load %arg7[%c0, %c0_1] : memref<7x16xf32, #tpu.memory_space<vmem>>, vector<7x16xf32>
    %c0_2 = arith.constant 0 : index
    %c0_3 = arith.constant 0 : index
    %4 = vector.load %arg4[%c0_2, %c0_3] : memref<16x32xf32, #tpu.memory_space<vmem>>, vector<16x32xf32>
    %cst = arith.constant dense<0.000000e+00> : vector<7x32xf32>
    %5 = tpu.matmul %3, %4, %cst {dimension_numbers = #tpu.dot_dimension_numbers<[1], [0], [0], [1], [0, 0, 1, 1], [], []>} : vector<7x16xf32>, vector<16x32xf32>, vector<7x32xf32> -> vector<7x32xf32>
    %c0_4 = arith.constant 0 : index
    %c0_5 = arith.constant 0 : index
    %6 = vector.load %arg5[%c0_4, %c0_5] : memref<1x32xf32, #tpu.memory_space<vmem>>, vector<1x32xf32>
    %7 = vector.broadcast %6 : vector<1x32xf32> to vector<7x32xf32>
    %8 = arith.addf %5, %7 : vector<7x32xf32>
    %c0_6 = arith.constant 0 : index
    %c0_7 = arith.constant 0 : index
    %c0_8 = arith.constant 0 : index
    %9 = vector.load %arg6[%c0_6, %c0_7, %c0_8] : memref<1x7x32xf32, #tpu.memory_space<vmem>>, vector<1x7x32xf32>
    %10 = vector.shape_cast %9 : vector<1x7x32xf32> to vector<7x32xf32>
    %11 = vector.shape_cast %8 : vector<7x32xf32> to vector<1x7x32xf32>
    tpu.vector_store %arg6[%c0_6, %c0_7, %c0_8], %11 {strides = array<i32>} : memref<1x7x32xf32, #tpu.memory_space<vmem>>, vector<1x7x32xf32>,
    return
  }
  func.func @transform_0(%arg0: i32, %arg1: i32) -> (i32, i32, i32) {
    %c0_i32 = arith.constant 0 : i32
    %c0_i32_0 = arith.constant 0 : i32
    %c0_i32_1 = arith.constant 0 : i32
    return %arg0, %c0_i32, %c0_i32_0 : i32, i32, i32
  }
  func.func @transform_1(%arg0: i32, %arg1: i32) -> (i32, i32, i32) {
    %c0_i32 = arith.constant 0 : i32
    %c0_i32_0 = arith.constant 0 : i32
    %c0_i32_1 = arith.constant 0 : i32
    return %arg0, %c0_i32, %c0_i32_0 : i32, i32, i32
  }
  func.func @transform_2(%arg0: i32, %arg1: i32) -> (i32, i32) {
    %c0_i32 = arith.constant 0 : i32
    %c0_i32_0 = arith.constant 0 : i32
    return %c0_i32, %arg1 : i32, i32
  }
  func.func @transform_3(%arg0: i32, %arg1: i32) -> (i32, i32) {
    %c0_i32 = arith.constant 0 : i32
    %c0_i32_0 = arith.constant 0 : i32
    return %c0_i32, %arg1 : i32, i32
  }
  func.func @transform_4(%arg0: i32, %arg1: i32) -> (i32, i32, i32) {
    %c0_i32 = arith.constant 0 : i32
    %c0_i32_0 = arith.constant 0 : i32
    return %arg0, %c0_i32, %arg1 : i32, i32, i32
  }
}

</mosaic_0001>

<llo_original>
// kernel: data_embedding_inverted.1
$region0: #{data_embedding_inverted.1}
  #allocation0 [shape = 'u32[]', space=smem, size = 0x4, offset = 0x4, fixed_abs, tag = 'smem constant byte address 0x4 - core index']
  #allocation1 [shape = 'u32[144,128]{1,0:T(1,128)}', space=vmem, size = 0x12000, scoped, tag = 'internal scratch']
  #allocation2 [shape = 'f32[7,16]{1,0:T(8,128)}', space=vmem, size = 0x1000, scoped, tag = 'scratch operand']
  %s0 = inlined_call_operand.vmem [shape: f32[2,16,4], index: 0, kind: input, shape index: {}]
  %s1 = inlined_call_operand.vmem [shape: f32[2,16,3], index: 1, kind: input, shape index: {}]
  %s2 = inlined_call_operand.vmem [shape: f32[16,32], index: 2, kind: input, shape index: {}]
  %s3 = inlined_call_operand.vmem [shape: f32[1,32], index: 3, kind: input, shape index: {}]
  %s4 = inlined_call_operand.vmem [shape: f32[2,7,32], index: 4, kind: output, shape index: {}]
  %s5 = sld [smem:[#allocation0]]
  $region53: #{data_embedding_inverted.1} parent=0
    _
  %s7 = ssub.s32 1, %s5
  %s8 = scalar_select 0, %s7, %s5
  loop: start=0, step=1, limit=4
  $region2: #{data_embedding_inverted.1} parent=0 // loop_pre_header
    _
  $region3: #{data_embedding_inverted.1} parent=0 // loop_header
    %s10 = sphi 0, %s14
    %p11 = scmp.ge.s32.totalorder %s10, 4
    %s17 = sphi 0, %s29
    %s18 = sphi 0, %s25
    %s19 = sphi 0, %s17
    %s20 = sphi 0, %s18
    %s21 = sphi 0, %s19
    %s22 = sphi 0, %s20
    %s32 = sphi 0, %s34
    %s35 = sphi 0, %s32
    %s36 = sphi 0, %s35
    %s52 = sphi 0, %s36
    %s58 = sphi 0, %s60
    %s61 = sphi 0, %s58
    %s62 = sphi 0, %s61
    %s78 = sphi 0, %s62
    %s84 = sphi 0, %s86
    %s87 = sphi 0, %s84
    %s88 = sphi 0, %s87
    %s104 = sphi 0, %s88
    %s110 = sphi 0, %s112
    %s113 = sphi 0, %s110
    %s114 = sphi 0, %s113
    %s130 = sphi 0, %s114
    %s138 = sphi 0, %s140
    %s141 = sphi 0, %s138
    %s142 = sphi 0, %s141
    %s158 = sphi 0, %s142
  $region4: #{data_embedding_inverted.1} parent=0 // loop_header_branch
    %13 = sbr.rel (%p11) target = $region8
  $region5: #{data_embedding_inverted.1} parent=0 // loop_body
    %s15 = ssub.s32 %s10, 1
    %s16 = ssub.s32 %s10, 2
    %s23 = sadd.s32 1, %s18
    %p24 = scmp.ge.s32.totalorder %s23, 1
    %s25 = scalar_select %p24, 0, %s23
    %s26 = sadd.s32 1, %s17
    %s27 = scalar_select %p24, %s26, %s17
    %p28 = scmp.ge.s32.totalorder %s27, 2
    %s29 = scalar_select %p28, 0, %s27
    %s30 = ssub.s32 %s17, %s29
    %p31 = scmp.eq.s32.totalorder %s30, 0
    %s33 = sadd.s32 %s32, 1
    %s34 = scalar_select %p31, %s32, %s33
    %p37 = pneg %p31
    %p38 = scmp.eq.s32.totalorder %s10, 1
    %p39 = por %p37, %p38
    %p40 = scmp.ne.s32.totalorder %s32, %s35
    %p41 = scmp.eq.s32.totalorder %s10, 0
    %p42 = por %p40, %p41
    %p43 = scmp.ne.s32.totalorder %s32, %s35
    %p44 = scmp.eq.s32.totalorder %s15, 1
    %p45 = por %p43, %p44
    %p46 = scmp.ne.s32.totalorder %s35, %s36
    %p47 = scmp.eq.s32.totalorder %s15, 0
    %p48 = por %p46, %p47
    %p49 = scmp.ne.s32.totalorder %s35, %s36
    %p50 = scmp.eq.s32.totalorder %s16, 1
    %p51 = por %p49, %p50
    %p53 = scmp.ne.s32.totalorder %s36, %s52
    %p54 = scmp.eq.s32.totalorder %s16, 0
    %p55 = por %p53, %p54
    %s56 = ssub.s32 %s17, %s29
    %p57 = scmp.eq.s32.totalorder %s56, 0
    %s59 = sadd.s32 %s58, 1
    %s60 = scalar_select %p57, %s58, %s59
    %p63 = pneg %p57
    %p64 = scmp.eq.s32.totalorder %s10, 1
    %p65 = por %p63, %p64
    %p66 = scmp.ne.s32.totalorder %s58, %s61
    %p67 = scmp.eq.s32.totalorder %s10, 0
    %p68 = por %p66, %p67
    %p69 = scmp.ne.s32.totalorder %s58, %s61
    %p70 = scmp.eq.s32.totalorder %s15, 1
    %p71 = por %p69, %p70
    %p72 = scmp.ne.s32.totalorder %s61, %s62
    %p73 = scmp.eq.s32.totalorder %s15, 0
    %p74 = por %p72, %p73
    %p75 = scmp.ne.s32.totalorder %s61, %s62
    %p76 = scmp.eq.s32.totalorder %s16, 1
    %p77 = por %p75, %p76
    %p79 = scmp.ne.s32.totalorder %s62, %s78
    %p80 = scmp.eq.s32.totalorder %s16, 0
    %p81 = por %p79, %p80
    %s82 = ssub.s32 %s18, %s25
    %p83 = scmp.eq.s32.totalorder %s82, 0
    %s85 = sadd.s32 %s84, 1
    %s86 = scalar_select %p83, %s84, %s85
    %p89 = pneg %p83
    %p90 = scmp.eq.s32.totalorder %s10, 1
    %p91 = por %p89, %p90
    %p92 = scmp.ne.s32.totalorder %s84, %s87
    %p93 = scmp.eq.s32.totalorder %s10, 0
    %p94 = por %p92, %p93
    %p95 = scmp.ne.s32.totalorder %s84, %s87
    %p96 = scmp.eq.s32.totalorder %s15, 1
    %p97 = por %p95, %p96
    %p98 = scmp.ne.s32.totalorder %s87, %s88
    %p99 = scmp.eq.s32.totalorder %s15, 0
    %p100 = por %p98, %p99
    %p101 = scmp.ne.s32.totalorder %s87, %s88
    %p102 = scmp.eq.s32.totalorder %s16, 1
    %p103 = por %p101, %p102
    %p105 = scmp.ne.s32.totalorder %s88, %s104
    %p106 = scmp.eq.s32.totalorder %s16, 0
    %p107 = por %p105, %p106
    %s108 = ssub.s32 %s18, %s25
    %p109 = scmp.eq.s32.totalorder %s108, 0
    %s111 = sadd.s32 %s110, 1
    %s112 = scalar_select %p109, %s110, %s111
    %p115 = pneg %p109
    %p116 = scmp.eq.s32.totalorder %s10, 1
    %p117 = por %p115, %p116
    %p118 = scmp.ne.s32.totalorder %s110, %s113
    %p119 = scmp.eq.s32.totalorder %s10, 0
    %p120 = por %p118, %p119
    %p121 = scmp.ne.s32.totalorder %s110, %s113
    %p122 = scmp.eq.s32.totalorder %s15, 1
    %p123 = por %p121, %p122
    %p124 = scmp.ne.s32.totalorder %s113, %s114
    %p125 = scmp.eq.s32.totalorder %s15, 0
    %p126 = por %p124, %p125
    %p127 = scmp.ne.s32.totalorder %s113, %s114
    %p128 = scmp.eq.s32.totalorder %s16, 1
    %p129 = por %p127, %p128
    %p131 = scmp.ne.s32.totalorder %s114, %s130
    %p132 = scmp.eq.s32.totalorder %s16, 0
    %p133 = por %p131, %p132
    %s134 = ssub.s32 %s17, %s29
    %s135 = ssub.s32 %s18, %s25
    %s136 = sor.u32 %s134, %s135
    %p137 = scmp.eq.s32.totalorder %s136, 0
    %s139 = sadd.s32 %s138, 1
    %s140 = scalar_select %p137, %s138, %s139
    %p143 = pneg %p137
    %p144 = scmp.eq.s32.totalorder %s10, 1
    %p145 = por %p143, %p144
    %p146 = scmp.ne.s32.totalorder %s138, %s141
    %p147 = scmp.eq.s32.totalorder %s10, 0
    %p148 = por %p146, %p147
    %p149 = scmp.ne.s32.totalorder %s138, %s141
    %p150 = scmp.eq.s32.totalorder %s15, 1
    %p151 = por %p149, %p150
    %p152 = scmp.ne.s32.totalorder %s141, %s142
    %p153 = scmp.eq.s32.totalorder %s15, 0
    %p154 = por %p152, %p153
    %p155 = scmp.ne.s32.totalorder %s141, %s142
    %p156 = scmp.eq.s32.totalorder %s16, 1
    %p157 = por %p155, %p156
    %p159 = scmp.ne.s32.totalorder %s142, %s158
    %p160 = scmp.eq.s32.totalorder %s16, 0
    %p161 = por %p159, %p160
    %p162 = scmp.le.s32.totalorder 1, %s10
    %p163 = scmp.lt.s32.totalorder %s10, 3
    %p164 = pnand %p162, %p163
    %p165 = pneg %p164
    // Predicated region
    $region9: #{data_embedding_inverted.1} parent=5 // pred_check
      _
    $region10: #{data_embedding_inverted.1} parent=5 // pred_check_branch
      %167 = sbr.rel (%p164) target = $region12
    $region11: #{data_embedding_inverted.1} parent=5 // pred_region
      %s168 = ssub.s32 %s10, 1
      // Predicated region
      $region13: #{data_embedding_inverted.1} parent=11 // pred_check
        %p169 = pneg %p100
      $region14: #{data_embedding_inverted.1} parent=11 // pred_check_branch
        %171 = sbr.rel (%p169) target = $region16
      $region15: #{data_embedding_inverted.1} parent=11 // pred_region
        %p172 = scmp.lt.s32.totalorder %s20, 0
        %s173 = scalar_select %p172, %s20, 0
        %s174 = smul.addr %s173, 8
        %s175 = scalar_lea.vmem %s2, %s174
      $region16: #{data_embedding_inverted.1} parent=11 // pred_fallthru
        _
      // Predicated region
      $region17: #{data_embedding_inverted.1} parent=11 // pred_check
        %p176 = pneg %p126
      $region18: #{data_embedding_inverted.1} parent=11 // pred_check_branch
        %178 = sbr.rel (%p176) target = $region20
      $region19: #{data_embedding_inverted.1} parent=11 // pred_region
        %p179 = scmp.lt.s32.totalorder %s20, 0
        %s180 = scalar_select %p179, %s20, 0
        %s181 = scalar_lea.vmem %s3, %s180
      $region20: #{data_embedding_inverted.1} parent=11 // pred_fallthru
        _
    $region12: #{data_embedding_inverted.1} parent=5 // pred_fallthru
      _
    %p182 = scmp.lt.s32.totalorder %s10, 2
    // Predicated region
    $region21: #{data_embedding_inverted.1} parent=5 // pred_check
      %p183 = pneg %p182
    $region22: #{data_embedding_inverted.1} parent=5 // pred_check_branch
      %185 = sbr.rel (%p183) target = $region24
    $region23: #{data_embedding_inverted.1} parent=5 // pred_region
      // Predicated region
      $region25: #{data_embedding_inverted.1} parent=23 // pred_check
        %p186 = pneg %p42
      $region26: #{data_embedding_inverted.1} parent=23 // pred_check_branch
        %188 = sbr.rel (%p186) target = $region28
      $region27: #{data_embedding_inverted.1} parent=23 // pred_region
        %p189 = scmp.lt.s32.totalorder %s17, 1
        %s190 = scalar_select %p189, %s17, 1
        %s191 = smul.addr %s190, 2
        %s192 = smul.addr %s191, 8
        %s193 = scalar_lea.vmem %s0, %s192
      $region28: #{data_embedding_inverted.1} parent=23 // pred_fallthru
        _
      // Predicated region
      $region29: #{data_embedding_inverted.1} parent=23 // pred_check
        %p194 = pneg %p68
      $region30: #{data_embedding_inverted.1} parent=23 // pred_check_branch
        %196 = sbr.rel (%p194) target = $region32
      $region31: #{data_embedding_inverted.1} parent=23 // pred_region
        %p197 = scmp.lt.s32.totalorder %s17, 1
        %s198 = scalar_select %p197, %s17, 1
        %s199 = smul.addr %s198, 2
        %s200 = smul.addr %s199, 8
        %s201 = scalar_lea.vmem %s1, %s200
      $region32: #{data_embedding_inverted.1} parent=23 // pred_fallthru
        _
    $region24: #{data_embedding_inverted.1} parent=5 // pred_fallthru
      _
    %p202 = scmp.le.s32.totalorder 1, %s10
    %p203 = scmp.lt.s32.totalorder %s10, 3
    %p204 = pnand %p202, %p203
    %p205 = pneg %p204
    // Predicated region
    $region33: #{data_embedding_inverted.1} parent=5 // pred_check
      _
    $region34: #{data_embedding_inverted.1} parent=5 // pred_check_branch
      %207 = sbr.rel (%p204) target = $region36
    $region35: #{data_embedding_inverted.1} parent=5 // pred_region
      %s208 = ssub.s32 %s10, 1
      %p209 = scmp.lt.s32.totalorder %s19, 1
      %s210 = scalar_select %p209, %s19, 1
      %s211 = smul.addr %s210, 2
      %s212 = smul.addr %s211, 8
      %s213 = scalar_lea.vmem %s0, %s212
      %p214 = pneg %p48
      %p215 = pneg %p45
      %p216 = scmp.lt.s32.totalorder %s19, 1
      %s217 = scalar_select %p216, %s19, 1
      %s218 = smul.addr %s217, 2
      %s219 = smul.addr %s218, 8
      %s220 = scalar_lea.vmem %s1, %s219
      %p221 = pneg %p74
      %p222 = pneg %p71
      %p223 = scmp.lt.s32.totalorder %s20, 0
      %s224 = scalar_select %p223, %s20, 0
      %s225 = smul.addr %s224, 8
      %s226 = scalar_lea.vmem %s2, %s225
      %p227 = pneg %p100
      %p228 = pneg %p97
      %p229 = scmp.lt.s32.totalorder %s20, 0
      %s230 = scalar_select %p229, %s20, 0
      %s231 = scalar_lea.vmem %s3, %s230
      %p232 = pneg %p126
      %p233 = pneg %p123
      %p234 = pneg %p154
      %p235 = pneg %p151
      %p236 = scmp.lt.s32.totalorder %s19, 1
      %s237 = scalar_select %p236, %s19, 1
      %p238 = scmp.lt.s32.totalorder %s20, 0
      %s239 = scalar_select %p238, %s20, 0
      %s240 = sadd.s32 %s239, %s237
      %s241 = smul.addr %s240, 8
      %s242 = scalar_lea.vmem %s4, %s241
      %p243 = scmp.lt.s32.totalorder %s19, 1
      %s244 = scalar_select %p243, %s19, 1
      %s245 = smul.addr %s244, 2
      %s246 = smul.addr %s245, 8
      %s247 = scalar_lea.vmem %s0, %s246
      %p248 = scmp.lt.s32.totalorder %s19, 1
      %s249 = scalar_select %p248, %s19, 1
      %s250 = smul.addr %s249, 2
      %s251 = smul.addr %s250, 8
      %s252 = scalar_lea.vmem %s1, %s251
      %p253 = scmp.lt.s32.totalorder %s20, 0
      %s254 = scalar_select %p253, %s20, 0
      %s255 = smul.addr %s254, 8
      %s256 = scalar_lea.vmem %s2, %s255
      %p257 = scmp.lt.s32.totalorder %s20, 0
      %s258 = scalar_select %p257, %s20, 0
      %s259 = scalar_lea.vmem %s3, %s258
      %p260 = scmp.lt.s32.totalorder %s19, 1
      %s261 = scalar_select %p260, %s19, 1
      %p262 = scmp.lt.s32.totalorder %s20, 0
      %s263 = scalar_select %p262, %s20, 0
      %s264 = sadd.s32 %s263, %s261
      %s265 = smul.addr %s264, 8
      %s266 = scalar_lea.vmem %s4, %s265
      %p267 = scmp.eq.s32.totalorder %s20, 0
      // Predicated region
      $region37: #{data_embedding_inverted.1} parent=35 // pred_check
        %p268 = pneg %p267
      $region38: #{data_embedding_inverted.1} parent=35 // pred_check_branch
        %270 = sbr.rel (%p268) target = $region40
      $region39: #{data_embedding_inverted.1} parent=35 // pred_region
        %v271 = vld [vmem:[%s247] sm:$0xff]
        %v272 = vld [vmem:[%s247 + $0x8] sm:$0xff]
        %273 = vxpose.xlu0.b32.start [1/16] %v271, 128
        %274 = vxpose.xlu0.b32.cont [2/16] %v272, 128
        %275 = vxpose.xlu0.b32.cont [3/16] 0.0, 128
        %276 = vxpose.xlu0.b32.cont [4/16] 0.0, 128
        %277 = vxpose.xlu0.b32.cont [5/16] 0.0, 128
        %278 = vxpose.xlu0.b32.cont [6/16] 0.0, 128
        %279 = vxpose.xlu0.b32.cont [7/16] 0.0, 128
        %280 = vxpose.xlu0.b32.cont [8/16] 0.0, 128
        %281 = vxpose.xlu0.b32.cont [9/16] 0.0, 128
        %282 = vxpose.xlu0.b32.cont [10/16] 0.0, 128
        %283 = vxpose.xlu0.b32.cont [11/16] 0.0, 128
        %284 = vxpose.xlu0.b32.cont [12/16] 0.0, 128
        %285 = vxpose.xlu0.b32.cont [13/16] 0.0, 128
        %286 = vxpose.xlu0.b32.cont [14/16] 0.0, 128
        %287 = vxpose.xlu0.b32.cont [15/16] 0.0, 128
        %288 = vxpose.xlu0.b32.end [16/16] 0.0, 128
        %v289 = vpop.trf.xlu0
        %v290 = vpop.trf.xlu0
        %v291 = vpop.trf.xlu0
        %v292 = vpop.trf.xlu0
        %v293 = vpop.trf.xlu0
        %v294 = vpop.trf.xlu0
        %v295 = vpop.trf.xlu0
        %v296 = vpop.trf.xlu0
        %v297 = vpop.trf.xlu0
        %v298 = vpop.trf.xlu0
        %v299 = vpop.trf.xlu0
        %v300 = vpop.trf.xlu0
        %v301 = vpop.trf.xlu0
        %v302 = vpop.trf.xlu0
        %v303 = vpop.trf.xlu0
        %v304 = vpop.trf.xlu0
        %vm305 = vcmask 125952
        %306 = vst.msk [vmem:[#allocation2] sm:$0xf] %vm305, %v289
        %v307 = vld [vmem:[%s252] sm:$0xff]
        %v308 = vld [vmem:[%s252 + $0x8] sm:$0xff]
        %309 = vxpose.xlu0.b32.start [1/16] %v307, 128
        %310 = vxpose.xlu0.b32.cont [2/16] %v308, 128
        %311 = vxpose.xlu0.b32.cont [3/16] 0.0, 128
        %312 = vxpose.xlu0.b32.cont [4/16] 0.0, 128
        %313 = vxpose.xlu0.b32.cont [5/16] 0.0, 128
        %314 = vxpose.xlu0.b32.cont [6/16] 0.0, 128
        %315 = vxpose.xlu0.b32.cont [7/16] 0.0, 128
        %316 = vxpose.xlu0.b32.cont [8/16] 0.0, 128
        %317 = vxpose.xlu0.b32.cont [9/16] 0.0, 128
        %318 = vxpose.xlu0.b32.cont [10/16] 0.0, 128
        %319 = vxpose.xlu0.b32.cont [11/16] 0.0, 128
        %320 = vxpose.xlu0.b32.cont [12/16] 0.0, 128
        %321 = vxpose.xlu0.b32.cont [13/16] 0.0, 128
        %322 = vxpose.xlu0.b32.cont [14/16] 0.0, 128
        %323 = vxpose.xlu0.b32.cont [15/16] 0.0, 128
        %324 = vxpose.xlu0.b32.end [16/16] 0.0, 128
        %v325 = vpop.trf.xlu0
        %v326 = vpop.trf.xlu0
        %v327 = vpop.trf.xlu0
        %v328 = vpop.trf.xlu0
        %v329 = vpop.trf.xlu0
        %v330 = vpop.trf.xlu0
        %v331 = vpop.trf.xlu0
        %v332 = vpop.trf.xlu0
        %v333 = vpop.trf.xlu0
        %v334 = vpop.trf.xlu0
        %v335 = vpop.trf.xlu0
        %v336 = vpop.trf.xlu0
        %v337 = vpop.trf.xlu0
        %v338 = vpop.trf.xlu0
        %v339 = vpop.trf.xlu0
        %v340 = vpop.trf.xlu0
        %vm341 = vcmask 124928
        %342 = vst.msk [vmem:[#allocation2 + $0x4] sm:$0x7] %vm341, %v325
      $region40: #{data_embedding_inverted.1} parent=35 // pred_fallthru
        _
      %v343 = vld [vmem:[#allocation2] sm:$0x7f]
      %v344 = vld [vmem:[%s256] sm:$0xff]
      %v345 = vld [vmem:[%s256 + $0x8] sm:$0xff]
      %v346 = vld [vmem:[%s259] sm:$0x1]
      %v348 = vlaneseq
      %v349 = vshrl.u32 %v348, 7
      %v350 = vsub.s32 0, %v349
      %v351 = vrot.slane %v346, %v350
      %vm353 = vcmask 130048
      %v355 = vsel %vm353, %v343, 0
      %357 = vmatprep.subr.mxu0 0.0
      %358 = vmatpush1.msra.mxu0 %v344
      %359 = vmatprep.subr.mxu0 0.0
      %360 = vmatpush1.msra.mxu0 %v345
      %361 = vmatprep.subr.mxu0 0.0
      %362 = vmatpush1.msra.mxu0 0.0
      %363 = vmatprep.subr.mxu0 0.0
      %364 = vmatpush1.msra.mxu0 0.0
      %365 = vmatprep.subr.mxu0 0.0
      %366 = vmatpush1.msra.mxu0 0.0
      %367 = vmatprep.subr.mxu0 0.0
      %368 = vmatpush1.msra.mxu0 0.0
      %369 = vmatprep.subr.mxu0 0.0
      %370 = vmatpush1.msra.mxu0 0.0
      %371 = vmatprep.subr.mxu0 0.0
      %372 = vmatpush1.msra.mxu0 0.0
      %373 = vmatprep.subr.mxu0 0.0
      %374 = vmatpush1.msra.mxu0 0.0
      %375 = vmatprep.subr.mxu0 0.0
      %376 = vmatpush1.msra.mxu0 0.0
      %377 = vmatprep.subr.mxu0 0.0
      %378 = vmatpush1.msra.mxu0 0.0
      %379 = vmatprep.subr.mxu0 0.0
      %380 = vmatpush1.msra.mxu0 0.0
      %381 = vmatprep.subr.mxu0 0.0
      %382 = vmatpush1.msra.mxu0 0.0
      %383 = vmatprep.subr.mxu0 0.0
      %384 = vmatpush1.msra.mxu0 0.0
      %385 = vmatprep.subr.mxu0 0.0
      %386 = vmatpush1.msra.mxu0 0.0
      %387 = vmatprep.subr.mxu0 0.0
      %388 = vmatpush1.msra.mxu0 0.0
      %389 = vmatprep.subr.mxu0 0.0
      %390 = vmatpush1.msra.mxu0 0.0
      %391 = vmatprep.subr.mxu0 0.0
      %392 = vmatpush1.msra.mxu0 0.0
      %393 = vmatprep.subr.mxu0 0.0
      %394 = vmatpush1.msra.mxu0 0.0
      %395 = vmatprep.subr.mxu0 0.0
      %396 = vmatpush1.msra.mxu0 0.0
      %397 = vmatprep.subr.mxu0 0.0
      %398 = vmatpush1.msra.mxu0 0.0
      %399 = vmatprep.subr.mxu0 0.0
      %400 = vmatpush1.msra.mxu0 0.0
      %401 = vmatprep.subr.mxu0 0.0
      %402 = vmatpush1.msra.mxu0 0.0
      %403 = vmatprep.subr.mxu0 0.0
      %404 = vmatpush1.msra.mxu0 0.0
      %405 = vmatprep.subr.mxu0 0.0
      %406 = vmatpush1.msra.mxu0 0.0
      %407 = vmatprep.subr.mxu0 0.0
      %408 = vmatpush1.msra.mxu0 0.0
      %409 = vmatprep.subr.mxu0 0.0
      %410 = vmatpush1.msra.mxu0 0.0
      %411 = vmatprep.subr.mxu0 0.0
      %412 = vmatpush1.msra.mxu0 0.0
      %413 = vmatprep.subr.mxu0 0.0
      %414 = vmatpush1.msra.mxu0 0.0
      %415 = vmatprep.subr.mxu0 0.0
      %416 = vmatpush1.msra.mxu0 0.0
      %417 = vmatprep.subr.mxu0 0.0
      %418 = vmatpush1.msra.mxu0 0.0
      %419 = vmatprep.subr.mxu0 0.0
      %420 = vmatpush1.msra.mxu0 0.0
      %421 = vmatprep.mubr.f32.mxu0 0.0
      %422 = vmatmul.mubr.f32.gmra.mrb[0].mxu0 %v355
      %v423 = vpop.f32.mrb[0].mxu0
      %v424 = vadd.f32 %v351, %v423
      %v425 = vpop.f32.mrb[0].mxu0
      %426 = vdwg.mxu0
      %vm427 = vcmask 260096
      %428 = vst.msk [vmem:[%s266] sm:$0x7f] %vm427, %v424
      %p429 = scmp.lt.s32.totalorder %s19, 1
      %s430 = scalar_select %p429, %s19, 1
      %p431 = scmp.lt.s32.totalorder %s20, 0
      %s432 = scalar_select %p431, %s20, 0
      %s433 = sadd.s32 %s432, %s430
      %s434 = smul.addr %s433, 8
      %s435 = scalar_lea.vmem %s4, %s434
      // Predicated region
      $region41: #{data_embedding_inverted.1} parent=35 // pred_check
        %p436 = pneg %p151
      $region42: #{data_embedding_inverted.1} parent=35 // pred_check_branch
        %438 = sbr.rel (%p436) target = $region44
      $region43: #{data_embedding_inverted.1} parent=35 // pred_region
        _
      $region44: #{data_embedding_inverted.1} parent=35 // pred_fallthru
        _
    $region36: #{data_embedding_inverted.1} parent=5 // pred_fallthru
      _
    %p439 = scmp.le.s32.totalorder 2, %s10
    // Predicated region
    $region45: #{data_embedding_inverted.1} parent=5 // pred_check
      %p440 = pneg %p439
    $region46: #{data_embedding_inverted.1} parent=5 // pred_check_branch
      %442 = sbr.rel (%p440) target = $region48
    $region47: #{data_embedding_inverted.1} parent=5 // pred_region
      %s443 = ssub.s32 %s10, 2
      // Predicated region
      $region49: #{data_embedding_inverted.1} parent=47 // pred_check
        %p444 = pneg %p157
      $region50: #{data_embedding_inverted.1} parent=47 // pred_check_branch
        %446 = sbr.rel (%p444) target = $region52
      $region51: #{data_embedding_inverted.1} parent=47 // pred_region
        %p447 = scmp.lt.s32.totalorder %s21, 1
        %s448 = scalar_select %p447, %s21, 1
        %p449 = scmp.lt.s32.totalorder %s22, 0
        %s450 = scalar_select %p449, %s22, 0
        %s451 = sadd.s32 %s450, %s448
        %s452 = smul.addr %s451, 8
        %s453 = scalar_lea.vmem %s4, %s452
      $region52: #{data_embedding_inverted.1} parent=47 // pred_fallthru
        _
    $region48: #{data_embedding_inverted.1} parent=5 // pred_fallthru
      _
  $region6: #{data_embedding_inverted.1} parent=0 // loop_footer
    %s14 = sadd.s32 1, %s10
  $region7: #{data_embedding_inverted.1} parent=0 // loop_footer_branch
    %9 = sbr.rel target = $region3
  $region8: #{data_embedding_inverted.1} parent=0 // loop_exit
    _

</llo_original>
